<compile_context>
chip_gen: v6e
topology: v6e:2x2x1
jax: 0.10.0
libtpu: 0.0.40
codegen_flags: <defaults>
</compile_context>

<pallas_src>
import functools

import jax
import jax.numpy as jnp
from jax.experimental import pallas as pl
from jax.experimental.pallas import tpu as pltpu

_LANES = 128
_TARGET_TILE_BYTES = 2 * 1024 * 1024  # ~2 MiB per input per pipeline buffer


def _hinge_partial_kernel(o_ref, t_ref, partial_ref, *, tile_rows, partial_rows,
                          tail_valid, last_block):
    """One grid step: hinge over a (tile_rows, 128) tile -> (1, partial_rows, 128)."""

    o = o_ref[...].astype(jnp.float32)
    t = t_ref[...].astype(jnp.float32)
    hinge = jnp.maximum(1.0 - o * t, 0.0)

    def reduce_rows(x):
        if partial_rows == 8:
            # Sublane-grouped reshape (no data movement) + tree of vreg adds on
            # the VPU; avoids the cross-sublane XLU reduce and keeps the store
            # a full unmasked (8, 128) vreg.
            return jnp.sum(x.reshape(tile_rows // 8, 8, _LANES), axis=0)
        return jnp.sum(x, axis=0, keepdims=True)

    if tail_valid is None:
        # Steady state: no lane pad and no partial edge block -> no mask at all.
        partial_ref[...] = reduce_rows(hinge)[None]
    else:
        # Only the last grid block can hold padded / out-of-range slots.
        @pl.when(pl.program_id(0) != last_block)
        def _():
            partial_ref[...] = reduce_rows(hinge)[None]

        @pl.when(pl.program_id(0) == last_block)
        def _():
            shape = (tile_rows, _LANES)
            row = jax.lax.broadcasted_iota(jnp.int32, shape, 0)
            lane = jax.lax.broadcasted_iota(jnp.int32, shape, 1)
            local_idx = row * _LANES + lane          # grid-invariant block-local index
            masked = jnp.where(local_idx < tail_valid, hinge, 0.0)
            partial_ref[...] = reduce_rows(masked)[None]


def hinge_loss(outputs, targets):
    """Pallas equivalent of torch.mean(torch.clamp(1 - outputs * targets, min=0))."""
    outputs = jnp.asarray(outputs)
    targets = jnp.asarray(targets)
    if outputs.shape != targets.shape:
        # TODO(synk): for a genuinely smaller `targets`, feed it through a
        # stride-0 / repeated-block BlockSpec instead of materializing the full
        # broadcast in HBM (this path is bandwidth-bound).
        outputs, targets = jnp.broadcast_arrays(outputs, targets)

    n_elems = int(outputs.size)
    o_flat = outputs.reshape(-1)
    t_flat = targets.reshape(-1)

    padded_n = pl.cdiv(n_elems, _LANES) * _LANES
    if padded_n != n_elems:
        # Rare ragged case: minimal pad to the next lane multiple; padded slots
        # are masked inside the kernel so the pad value is irrelevant.
        o_flat = jnp.pad(o_flat, (0, padded_n - n_elems))
        t_flat = jnp.pad(t_flat, (0, padded_n - n_elems))

    rows = padded_n // _LANES
    o2d = o_flat.reshape(rows, _LANES)  # metadata-only when no pad was needed
    t2d = t_flat.reshape(rows, _LANES)

    # ~2 MiB per input per pipeline buffer, scaled by dtype (bf16 -> 8192 rows).
    itemsize = max(jnp.dtype(outputs.dtype).itemsize, jnp.dtype(targets.dtype).itemsize)
    max_rows = max(8, (_TARGET_TILE_BYTES // (itemsize * _LANES)) // 8 * 8)

    if rows <= max_rows:
        if rows >= 16 and rows % 16 == 0:
            # Keep at least two blocks so v7x can shard the parallel grid axis
            # across both TensorCores; each half stays a multiple of 8 sublanes.
            tile_rows = rows // 2
        else:
            tile_rows = rows
    else:
        tile_rows = max_rows

    num_blocks = pl.cdiv(rows, tile_rows)
    partial_rows = 8 if tile_rows % 8 == 0 else 1

    # Static tail: only meaningful when there is a lane pad or a partial edge
    # block; computed as a Python int so no scalar/vector offset math (and no
    # int32 overflow) is needed in the kernel.
    if padded_n == n_elems and rows % tile_rows == 0:
        tail_valid = None
    else:
        tail_valid = n_elems - (num_blocks - 1) * tile_rows * _LANES

    kernel = functools.partial(
        _hinge_partial_kernel,
        tile_rows=tile_rows,
        partial_rows=partial_rows,
        tail_valid=tail_valid,
        last_block=num_blocks - 1,
    )

    partials = pl.pallas_call(
        kernel,
        out_shape=jax.ShapeDtypeStruct((num_blocks, partial_rows, _LANES), jnp.float32),
        grid_spec=pltpu.PrefetchScalarGridSpec(
            num_scalar_prefetch=0,
            grid=(num_blocks,),
            in_specs=[
                pl.BlockSpec((tile_rows, _LANES), lambda i: (i, 0)),
                pl.BlockSpec((tile_rows, _LANES), lambda i: (i, 0)),
            ],
            # Each grid step owns its own output block -> no carried state,
            # grid axis is truly parallel (v7x dual-TC sharding).
            out_specs=pl.BlockSpec((1, partial_rows, _LANES), lambda i: (i, 0, 0)),
        ),
        compiler_params=pltpu.CompilerParams(
            dimension_semantics=("parallel",),
        ),
    )(o2d, t2d)

    # Tiny finishing reduction over num_blocks * partial_rows * 128 partials.
    return jnp.sum(partials) / n_elems


def _reference(outputs, targets):
    o = jnp.asarray(outputs, jnp.float32)
    t = jnp.asarray(targets, jnp.float32)
    return jnp.mean(jnp.maximum(1.0 - o * t, 0.0))


if __name__ == "__main__":
    key = jax.random.PRNGKey(0)
    k_out, k_tgt = jax.random.split(key)

    # SVM-style inputs: scores and +/-1 labels, shape (batch=2, features=4, 16, 16).
    x_shape = (2, 4, 16, 16)
    outputs = jax.random.normal(k_out, x_shape, dtype=jnp.float32)
    targets = jnp.where(
        jax.random.bernoulli(k_tgt, 0.5, x_shape), 1.0, -1.0
    ).astype(jnp.float32)

    loss = hinge_loss(outputs, targets)
    jax.block_until_ready(loss)
    ref = _reference(outputs, targets)
    assert jnp.allclose(loss, ref, rtol=1e-6, atol=1e-6), (loss, ref)

    # Ragged element count (exercises the last-block tail-mask path).
    k2o, k2t = jax.random.split(jax.random.PRNGKey(1))
    odd_shape = (3, 5, 7)
    o_odd = jax.random.normal(k2o, odd_shape, dtype=jnp.float32)
    t_odd = jnp.where(jax.random.bernoulli(k2t, 0.5, odd_shape), 1.0, -1.0)
    loss_odd = hinge_loss(o_odd, t_odd)
    jax.block_until_ready(loss_odd)
    ref_odd = _reference(o_odd, t_odd)
    assert jnp.allclose(loss_odd, ref_odd, rtol=1e-6, atol=1e-6), (loss_odd, ref_odd)

    # Multi-block, mask-free steady state (rows % tile_rows == 0, no lane pad).
    k3o, k3t = jax.random.split(jax.random.PRNGKey(2))
    big_shape = (8, 4096)
    o_big = jax.random.normal(k3o, big_shape, dtype=jnp.float32)
    t_big = jnp.where(jax.random.bernoulli(k3t, 0.5, big_shape), 1.0, -1.0)
    loss_big = hinge_loss(o_big, t_big)
    jax.block_until_ready(loss_big)
    ref_big = _reference(o_big, t_big)
    assert jnp.allclose(loss_big, ref_big, rtol=1e-5, atol=1e-5), (loss_big, ref_big)

    # bf16 inputs keep native dtype through the DMA; upcast happens in-kernel.
    k4o, k4t = jax.random.split(jax.random.PRNGKey(3))
    o_bf16 = jax.random.normal(k4o, (4, 256), dtype=jnp.bfloat16)
    t_bf16 = jnp.where(jax.random.bernoulli(k4t, 0.5, (4, 256)), 1.0, -1.0).astype(
        jnp.bfloat16
    )
    loss_bf16 = hinge_loss(o_bf16, t_bf16)
    jax.block_until_ready(loss_bf16)
    ref_bf16 = _reference(o_bf16, t_bf16)
    assert jnp.allclose(loss_bf16, ref_bf16, rtol=1e-5, atol=1e-5), (loss_bf16, ref_bf16)

    print("KERNEL_OK")
</pallas_src>

<mosaic_0001>
module attributes {stable_mosaic.version = 11 : i64} {
  func.func @_hinge_partial_kernel(%arg0: i32, %arg1: memref<8x128xf32, #tpu.memory_space<vmem>>, %arg2: memref<8x128xf32, #tpu.memory_space<vmem>>, %arg3: memref<1x8x128xf32, #tpu.memory_space<vmem>>) attributes {dimension_semantics = [#tpu.dimension_semantics<parallel>], iteration_bounds = array<i64: 2>, scalar_prefetch = 0 : i64, scratch_operands = 0 : i64, tpu.core_type = #tpu.core_type<tc>, window_params = [{transform_indices = @transform_0, window_bounds = array<i64: 8, 128>}, {transform_indices = @transform_1, window_bounds = array<i64: 8, 128>}, {transform_indices = @transform_2, window_bounds = array<i64: 1, 8, 128>}]} {
    %c0 = arith.constant 0 : index
    %c0_0 = arith.constant 0 : index
    %0 = vector.load %arg1[%c0, %c0_0] : memref<8x128xf32, #tpu.memory_space<vmem>>, vector<8x128xf32>
    %c0_1 = arith.constant 0 : index
    %c0_2 = arith.constant 0 : index
    %1 = vector.load %arg2[%c0_1, %c0_2] : memref<8x128xf32, #tpu.memory_space<vmem>>, vector<8x128xf32>
    %2 = arith.mulf %0, %1 : vector<8x128xf32>
    %cst = arith.constant 1.000000e+00 : f32
    %3 = vector.broadcast %cst : f32 to vector<8x128xf32>
    %4 = arith.subf %3, %2 : vector<8x128xf32>
    %cst_3 = arith.constant 0.000000e+00 : f32
    %5 = vector.broadcast %cst_3 : f32 to vector<8x128xf32>
    %6 = arith.maximumf %4, %5 : vector<8x128xf32>
    %7 = vector.shape_cast %6 : vector<8x128xf32> to vector<1x8x128xf32>
    %cst_4 = arith.constant dense<0.000000e+00> : vector<8x128xf32>
    %8 = vector.multi_reduction <add>, %7, %cst_4 [0] : vector<1x8x128xf32> to vector<8x128xf32>
    %9 = vector.shape_cast %8 : vector<8x128xf32> to vector<1x8x128xf32>
    %c0_5 = arith.constant 0 : index
    %c0_6 = arith.constant 0 : index
    %c0_7 = arith.constant 0 : index
    %10 = vector.load %arg3[%c0_5, %c0_6, %c0_7] : memref<1x8x128xf32, #tpu.memory_space<vmem>>, vector<1x8x128xf32>
    tpu.vector_store %arg3[%c0_5, %c0_6, %c0_7], %9 {strides = array<i32>} : memref<1x8x128xf32, #tpu.memory_space<vmem>>, vector<1x8x128xf32>,
    return
  }
  func.func @transform_0(%arg0: i32) -> (i32, i32) {
    %c0_i32 = arith.constant 0 : i32
    %c0_i32_0 = arith.constant 0 : i32
    return %arg0, %c0_i32 : i32, i32
  }
  func.func @transform_1(%arg0: i32) -> (i32, i32) {
    %c0_i32 = arith.constant 0 : i32
    %c0_i32_0 = arith.constant 0 : i32
    return %arg0, %c0_i32 : i32, i32
  }
  func.func @transform_2(%arg0: i32) -> (i32, i32, i32) {
    %c0_i32 = arith.constant 0 : i32
    %c0_i32_0 = arith.constant 0 : i32
    %c0_i32_1 = arith.constant 0 : i32
    return %arg0, %c0_i32, %c0_i32_0 : i32, i32, i32
  }
}

</mosaic_0001>

<llo_original>
// kernel: tpu_custom_call.1
$region0: #{tpu_custom_call.1}
  #allocation0 [shape = 'u32[]', space=smem, size = 0x4, offset = 0x4, fixed_abs, tag = 'smem constant byte address 0x4 - core index']
  #allocation1 [shape = 'u32[144,128]{1,0:T(1,128)}', space=vmem, size = 0x12000, scoped, tag = 'internal scratch']
  %s0 = inlined_call_operand.hbm [shape: f32[16,128], index: 0, kind: input, shape index: {}]
  %s1 = inlined_call_operand.hbm [shape: f32[16,128], index: 1, kind: input, shape index: {}]
  %s2 = inlined_call_operand.hbm [shape: f32[2,8,128], index: 2, kind: output, shape index: {}]
  %s3 = sld [smem:[#allocation0]]
  $region49: #{tpu_custom_call.1} parent=0
    _
  %s5 = ssub.s32 1, %s3
  %s6 = scalar_select 0, %s5, %s3
  $region1: #{tpu_custom_call.1} parent=0
    #allocation2 [shape = 'u8[8192]{0}', space=vmem, size = 0x2000, scoped, tag = 'input window, operand 0']
    #allocation3 [shape = 's32[2]{0}', space=sflag, size = 0x8, scoped, tag = 'scoped memory for tpu_custom_call.1']
    #allocation4 [shape = 's32[2]{0}', space=sflag, size = 0x8, scoped, tag = 'scoped memory for tpu_custom_call.1']
    #allocation5 [shape = 'u8[8192]{0}', space=vmem, size = 0x2000, scoped, tag = 'input window, operand 1']
    #allocation6 [shape = 's32[2]{0}', space=sflag, size = 0x8, scoped, tag = 'scoped memory for tpu_custom_call.1']
    #allocation7 [shape = 'u8[8192]{0}', space=vmem, size = 0x2000, scoped, tag = 'output window, operand 0']
    %7 = vsyncpa [#allocation3], 0
    %s8 = scalar_lea.sflag [#allocation3], 1
    %9 = vsyncpa %s8, 0
    %10 = vsyncpa [#allocation6], 0
    %s11 = scalar_lea.sflag [#allocation6], 1
    %12 = vsyncpa %s11, 0
    %13 = vsyncpa [#allocation4], 0
    %s14 = scalar_lea.sflag [#allocation4], 1
    %15 = vsyncpa %s14, 0
    loop: start=0, step=1, limit=4
    $region2: #{tpu_custom_call.1} parent=1 // loop_pre_header
      _
    $region3: #{tpu_custom_call.1} parent=1 // loop_header
      %s17 = sphi 0, %s21
      %p18 = scmp.ge.s32.totalorder %s17, 4
      %s27 = sphi 0, %s29
      %s30 = sphi 0, %s27
      %s31 = sphi 0, %s30
      %s47 = sphi 0, %s31
      %s53 = sphi 0, %s55
      %s56 = sphi 0, %s53
      %s57 = sphi 0, %s56
      %s73 = sphi 0, %s57
      %s79 = sphi 0, %s81
      %s82 = sphi 0, %s79
      %s83 = sphi 0, %s82
      %s99 = sphi 0, %s83
    $region4: #{tpu_custom_call.1} parent=1 // loop_header_branch
      %20 = sbr.rel (%p18) target = $region8
    $region5: #{tpu_custom_call.1} parent=1 // loop_body
      %s22 = ssub.s32 %s17, 1
      %s23 = ssub.s32 %s17, 2
      %s24 = sadd.s32 %s17, 1
      %s25 = ssub.s32 %s17, %s24
      %p26 = scmp.eq.s32.totalorder %s25, 0
      %s28 = sadd.s32 %s27, 1
      %s29 = scalar_select %p26, %s27, %s28
      %p32 = pneg %p26
      %p33 = scmp.eq.s32.totalorder %s17, 1
      %p34 = por %p32, %p33
      %p35 = scmp.ne.s32.totalorder %s27, %s30
      %p36 = scmp.eq.s32.totalorder %s17, 0
      %p37 = por %p35, %p36
      %p38 = scmp.ne.s32.totalorder %s27, %s30
      %p39 = scmp.eq.s32.totalorder %s22, 1
      %p40 = por %p38, %p39
      %p41 = scmp.ne.s32.totalorder %s30, %s31
      %p42 = scmp.eq.s32.totalorder %s22, 0
      %p43 = por %p41, %p42
      %p44 = scmp.ne.s32.totalorder %s30, %s31
      %p45 = scmp.eq.s32.totalorder %s23, 1
      %p46 = por %p44, %p45
      %p48 = scmp.ne.s32.totalorder %s31, %s47
      %p49 = scmp.eq.s32.totalorder %s23, 0
      %p50 = por %p48, %p49
      %s51 = ssub.s32 %s17, %s24
      %p52 = scmp.eq.s32.totalorder %s51, 0
      %s54 = sadd.s32 %s53, 1
      %s55 = scalar_select %p52, %s53, %s54
      %p58 = pneg %p52
      %p59 = scmp.eq.s32.totalorder %s17, 1
      %p60 = por %p58, %p59
      %p61 = scmp.ne.s32.totalorder %s53, %s56
      %p62 = scmp.eq.s32.totalorder %s17, 0
      %p63 = por %p61, %p62
      %p64 = scmp.ne.s32.totalorder %s53, %s56
      %p65 = scmp.eq.s32.totalorder %s22, 1
      %p66 = por %p64, %p65
      %p67 = scmp.ne.s32.totalorder %s56, %s57
      %p68 = scmp.eq.s32.totalorder %s22, 0
      %p69 = por %p67, %p68
      %p70 = scmp.ne.s32.totalorder %s56, %s57
      %p71 = scmp.eq.s32.totalorder %s23, 1
      %p72 = por %p70, %p71
      %p74 = scmp.ne.s32.totalorder %s57, %s73
      %p75 = scmp.eq.s32.totalorder %s23, 0
      %p76 = por %p74, %p75
      %s77 = ssub.s32 %s17, %s24
      %p78 = scmp.eq.s32.totalorder %s77, 0
      %s80 = sadd.s32 %s79, 1
      %s81 = scalar_select %p78, %s79, %s80
      %p84 = pneg %p78
      %p85 = scmp.eq.s32.totalorder %s17, 1
      %p86 = por %p84, %p85
      %p87 = scmp.ne.s32.totalorder %s79, %s82
      %p88 = scmp.eq.s32.totalorder %s17, 0
      %p89 = por %p87, %p88
      %p90 = scmp.ne.s32.totalorder %s79, %s82
      %p91 = scmp.eq.s32.totalorder %s22, 1
      %p92 = por %p90, %p91
      %p93 = scmp.ne.s32.totalorder %s82, %s83
      %p94 = scmp.eq.s32.totalorder %s22, 0
      %p95 = por %p93, %p94
      %p96 = scmp.ne.s32.totalorder %s82, %s83
      %p97 = scmp.eq.s32.totalorder %s23, 1
      %p98 = por %p96, %p97
      %p100 = scmp.ne.s32.totalorder %s83, %s99
      %p101 = scmp.eq.s32.totalorder %s23, 0
      %p102 = por %p100, %p101
      %p103 = scmp.le.s32.totalorder 1, %s17
      %p104 = scmp.lt.s32.totalorder %s17, 3
      %p105 = pnand %p103, %p104
      %p106 = pneg %p105
      // Predicated region
      $region9: #{tpu_custom_call.1} parent=5 // pred_check
        _
      $region10: #{tpu_custom_call.1} parent=5 // pred_check_branch
        %108 = sbr.rel (%p105) target = $region12
      $region11: #{tpu_custom_call.1} parent=5 // pred_region
        %s109 = ssub.s32 %s17, 1
      $region12: #{tpu_custom_call.1} parent=5 // pred_fallthru
        _
      %p110 = scmp.lt.s32.totalorder %s17, 2
      // Predicated region
      $region13: #{tpu_custom_call.1} parent=5 // pred_check
        %p111 = pneg %p110
      $region14: #{tpu_custom_call.1} parent=5 // pred_check_branch
        %113 = sbr.rel (%p111) target = $region16
      $region15: #{tpu_custom_call.1} parent=5 // pred_region
        // Predicated region
        $region17: #{tpu_custom_call.1} parent=15 // pred_check
          %p114 = pneg %p37
        $region18: #{tpu_custom_call.1} parent=15 // pred_check_branch
          %116 = sbr.rel (%p114) target = $region20
        $region19: #{tpu_custom_call.1} parent=15 // pred_region
          %s117 = sand.u32 %s27, 1
          %s118 = scalar_lea.sflag [#allocation3], %s117
          %s119 = sand.u32 %s27, 1
          %s120 = smul.addr %s119, 8
          %s121 = scalar_lea.vmem [#allocation2], %s120
          %s123 = ssub.s32 128, 128
          %124 = vsyncadd %s118, %s123
          %s125 = smul.addr %s17, 128
          %s126 = scalar_lea.hbm %s0, %s125
          %s128 = sshll.u32 %s121, 4
          %s129 = int_to_ptr.vmem [resolvable:$true] %s128
          %131 = dma.hbm_to_vmem [thread:$0]  %s126, 128, %s129, %s118
        $region20: #{tpu_custom_call.1} parent=15 // pred_fallthru
          _
        // Predicated region
        $region21: #{tpu_custom_call.1} parent=15 // pred_check
          %p132 = pneg %p63
        $region22: #{tpu_custom_call.1} parent=15 // pred_check_branch
          %134 = sbr.rel (%p132) target = $region24
        $region23: #{tpu_custom_call.1} parent=15 // pred_region
          %s135 = sand.u32 %s53, 1
          %s136 = scalar_lea.sflag [#allocation6], %s135
          %s137 = sand.u32 %s53, 1
          %s138 = smul.addr %s137, 8
          %s139 = scalar_lea.vmem [#allocation5], %s138
          %s141 = ssub.s32 128, 128
          %142 = vsyncadd %s136, %s141
          %s143 = smul.addr %s17, 128
          %s144 = scalar_lea.hbm %s1, %s143
          %s146 = sshll.u32 %s139, 4
          %s147 = int_to_ptr.vmem [resolvable:$true] %s146
          %149 = dma.hbm_to_vmem [thread:$0]  %s144, 128, %s147, %s136
        $region24: #{tpu_custom_call.1} parent=15 // pred_fallthru
          _
      $region16: #{tpu_custom_call.1} parent=5 // pred_fallthru
        _
      %p150 = scmp.le.s32.totalorder 1, %s17
      %p151 = scmp.lt.s32.totalorder %s17, 3
      %p152 = pnand %p150, %p151
      %p153 = pneg %p152
      // Predicated region
      $region25: #{tpu_custom_call.1} parent=5 // pred_check
        _
      $region26: #{tpu_custom_call.1} parent=5 // pred_check_branch
        %155 = sbr.rel (%p152) target = $region28
      $region27: #{tpu_custom_call.1} parent=5 // pred_region
        %s156 = ssub.s32 %s17, 1
        %s157 = sand.u32 %s30, 1
        %s158 = scalar_lea.sflag [#allocation3], %s157
        %s159 = sand.u32 %s30, 1
        %s160 = smul.addr %s159, 8
        %s161 = scalar_lea.vmem [#allocation2], %s160
        // Predicated region
        $region29: #{tpu_custom_call.1} parent=27 // pred_check
          %p162 = pneg %p43
        $region30: #{tpu_custom_call.1} parent=27 // pred_check_branch
          %164 = sbr.rel (%p162) target = $region32
        $region31: #{tpu_custom_call.1} parent=27 // pred_region
          %165 = dma.done %s158, 128
        $region32: #{tpu_custom_call.1} parent=27 // pred_fallthru
          _
        %s166 = sand.u32 %s56, 1
        %s167 = scalar_lea.sflag [#allocation6], %s166
        %s168 = sand.u32 %s56, 1
        %s169 = smul.addr %s168, 8
        %s170 = scalar_lea.vmem [#allocation5], %s169
        // Predicated region
        $region33: #{tpu_custom_call.1} parent=27 // pred_check
          %p171 = pneg %p69
        $region34: #{tpu_custom_call.1} parent=27 // pred_check_branch
          %173 = sbr.rel (%p171) target = $region36
        $region35: #{tpu_custom_call.1} parent=27 // pred_region
          %174 = dma.done %s167, 128
        $region36: #{tpu_custom_call.1} parent=27 // pred_fallthru
          _
        %s175 = sand.u32 %s30, 1
        %s176 = scalar_lea.sflag [#allocation3], %s175
        %s177 = sand.u32 %s30, 1
        %s178 = smul.addr %s177, 8
        %s179 = scalar_lea.vmem [#allocation2], %s178
        %p180 = pneg %p43
        %p181 = pneg %p40
        %s182 = sand.u32 %s56, 1
        %s183 = scalar_lea.sflag [#allocation6], %s182
        %s184 = sand.u32 %s56, 1
        %s185 = smul.addr %s184, 8
        %s186 = scalar_lea.vmem [#allocation5], %s185
        %p187 = pneg %p69
        %p188 = pneg %p66
        %p189 = pneg %p95
        %p190 = pneg %p92
        %s191 = sand.u32 %s82, 1
        %s192 = scalar_lea.sflag [#allocation4], %s191
        %s193 = sand.u32 %s82, 1
        %s194 = smul.addr %s193, 8
        %s195 = scalar_lea.vmem [#allocation7], %s194
        %v196 = vld [vmem:[%s161] sm:$0xff]
        %v197 = vld [vmem:[%s170] sm:$0xff]
        %v198 = vmul.f32 %v196, %v197
        %v199 = vsub.f32 1.0, %v198
        %v200 = vmax.f32 %v199, 0.0
        %v201 = vadd.f32 %v200, 0.0
        %202 = vst [vmem:[%s195] sm:$0xff] %v201
        %s203 = sand.u32 %s82, 1
        %s204 = scalar_lea.sflag [#allocation4], %s203
        %s205 = sand.u32 %s82, 1
        %s206 = smul.addr %s205, 8
        %s207 = scalar_lea.vmem [#allocation7], %s206
        // Predicated region
        $region37: #{tpu_custom_call.1} parent=27 // pred_check
          %p208 = pneg %p92
        $region38: #{tpu_custom_call.1} parent=27 // pred_check_branch
          %210 = sbr.rel (%p208) target = $region40
        $region39: #{tpu_custom_call.1} parent=27 // pred_region
          %s212 = ssub.s32 128, 128
          %213 = vsyncadd %s204, %s212
          %s214 = smul.addr %s22, 128
          %s215 = scalar_lea.hbm %s2, %s214
          %s217 = sshll.u32 %s207, 4
          %s218 = int_to_ptr.vmem [resolvable:$true] %s217
          %220 = dma.vmem_to_hbm [thread:$0]  %s218, 128, %s215, %s204
        $region40: #{tpu_custom_call.1} parent=27 // pred_fallthru
          _
      $region28: #{tpu_custom_call.1} parent=5 // pred_fallthru
        _
      %p221 = scmp.le.s32.totalorder 2, %s17
      // Predicated region
      $region41: #{tpu_custom_call.1} parent=5 // pred_check
        %p222 = pneg %p221
      $region42: #{tpu_custom_call.1} parent=5 // pred_check_branch
        %224 = sbr.rel (%p222) target = $region44
      $region43: #{tpu_custom_call.1} parent=5 // pred_region
        %s225 = ssub.s32 %s17, 2
        // Predicated region
        $region45: #{tpu_custom_call.1} parent=43 // pred_check
          %p226 = pneg %p98
        $region46: #{tpu_custom_call.1} parent=43 // pred_check_branch
          %228 = sbr.rel (%p226) target = $region48
        $region47: #{tpu_custom_call.1} parent=43 // pred_region
          %s229 = sand.u32 %s83, 1
          %s230 = scalar_lea.sflag [#allocation4], %s229
          %s231 = sand.u32 %s83, 1
          %s232 = smul.addr %s231, 8
          %s233 = scalar_lea.vmem [#allocation7], %s232
          %234 = dma.done %s230, 128
        $region48: #{tpu_custom_call.1} parent=43 // pred_fallthru
          _
      $region44: #{tpu_custom_call.1} parent=5 // pred_fallthru
        _
    $region6: #{tpu_custom_call.1} parent=1 // loop_footer
      %s21 = sadd.s32 1, %s17
    $region7: #{tpu_custom_call.1} parent=1 // loop_footer_branch
      %16 = sbr.rel target = $region3
    $region8: #{tpu_custom_call.1} parent=1 // loop_exit
      _
    %235 = vsyncpa [#allocation3], 1
    %s236 = scalar_lea.sflag [#allocation3], 1
    %237 = vsyncpa %s236, 1
    %238 = vsyncpa [#allocation6], 1
    %s239 = scalar_lea.sflag [#allocation6], 1
    %240 = vsyncpa %s239, 1
    %241 = vsyncpa [#allocation4], 1
    %s242 = scalar_lea.sflag [#allocation4], 1
    %243 = vsyncpa %s242, 1

</llo_original>
